<compile_context>
chip_gen: v5e
topology: v5e:2x2
jax: 0.10.0
libtpu: 0.0.40
codegen_flags: <defaults>
</compile_context>

<pallas_src>
import jax
import jax.numpy as jnp
from jax.experimental import pallas as pl
from jax.experimental.pallas import tpu as pltpu

LANES = 128


def _round_up(x, m):
    return (x + m - 1) // m * m


def _head_kernel(x_ref, w_ref, b_ref, o_ref):
    # x_ref : (1, Cin, T)   one image's channel-major activation tile
    # w_ref : (Cout, Cin)   resident weight
    # b_ref : (Cout, 1)     resident bias (broadcast along lanes)
    # o_ref : (1, Cout, T)  channel-major output tile (lane-dense, unmasked vst)
    acc = jnp.dot(w_ref[...], x_ref[0], preferred_element_type=jnp.float32)
    o_ref[0] = (acc + b_ref[...]).astype(o_ref.dtype)


def instance_segmentation_head(x_nchw, w, b, *, tile_hw=2048):
    """1x1 Conv2d (stride 1, pad 0) as a single channel-major Pallas GEMM.

    x_nchw : (N, Cin, H, W)   -- same layout the PyTorch module consumes
    w      : (Cout, Cin)      -- torch Conv2d weight (Cout, Cin, 1, 1) squeezed
    b      : (Cout,)
    returns: (N, Cout, H, W)
    """
    N, Cin, H, W = x_nchw.shape
    Cout, Cin_w = w.shape
    assert Cin == Cin_w
    HW = H * W

    dtype = x_nchw.dtype
    x3 = x_nchw.reshape(N, Cin, HW)           # contiguous reshape: metadata only
    w2 = w.astype(dtype)                      # (Cout, Cin) small resident block
    b2 = b.astype(dtype).reshape(Cout, 1)

    # Spatial tile: lane-dense multiple of 128, capped at the image size.
    tile = min(tile_hw, _round_up(HW, LANES))
    tile = max(tile, LANES)
    # Keep >=2 grid steps so both v7x TensorCores get work (no-op on v5e/v6e).
    if N * pl.cdiv(HW, tile) < 2 and HW >= 2 * LANES:
        tile = _round_up(pl.cdiv(HW, 2), LANES)

    grid = (N, pl.cdiv(HW, tile))
    itemsize = jnp.dtype(dtype).itemsize
    cost = pl.CostEstimate(
        flops=2 * N * HW * Cin * Cout,
        transcendentals=0,
        bytes_accessed=(N * HW * (Cin + Cout) + Cin * Cout + Cout) * itemsize,
    )

    out = pl.pallas_call(
        _head_kernel,
        out_shape=jax.ShapeDtypeStruct((N, Cout, HW), dtype),
        grid=grid,
        in_specs=[
            pl.BlockSpec((1, Cin, tile), lambda n, t: (n, 0, t)),   # activations
            pl.BlockSpec((Cout, Cin), lambda n, t: (0, 0)),         # weight (resident)
            pl.BlockSpec((Cout, 1), lambda n, t: (0, 0)),           # bias  (resident)
        ],
        out_specs=pl.BlockSpec((1, Cout, tile), lambda n, t: (n, 0, t)),
        compiler_params=pltpu.CompilerParams(
            dimension_semantics=("parallel", "parallel")),
        cost_estimate=cost,
    )(x3, w2, b2)

    return out.reshape(N, Cout, H, W)


if __name__ == "__main__":
    key = jax.random.PRNGKey(0)
    kx, kw, kb = jax.random.split(key, 3)

    # Shapes consistent with the module: batch=2, NCHW (2, 54, 16, 16).
    N, H, W = 2, 16, 16
    in_chans, out_chans = 54, 36

    x = jax.random.normal(kx, (N, in_chans, H, W), jnp.float32)
    w = jax.random.normal(kw, (out_chans, in_chans), jnp.float32) / jnp.sqrt(float(in_chans))
    b = 0.01 * jax.random.normal(kb, (out_chans,), jnp.float32)

    out = instance_segmentation_head(x, w, b)        # -> (2, 36, 16, 16) NCHW
    jax.block_until_ready(out)

    assert out.shape == (N, out_chans, H, W)
    # Correctness vs. plain-JAX reference of the 1x1 conv (NCHW).
    ref = jnp.einsum("nchw,oc->nohw", x, w) + b[None, :, None, None]
    assert jnp.allclose(out, ref, atol=1e-4, rtol=1e-4)
    assert jnp.all(jnp.isfinite(out))
    print("KERNEL_OK")
</pallas_src>

<mosaic_0001>
module attributes {stable_mosaic.version = 11 : i64} {
  func.func @_head_kernel(%arg0: i32, %arg1: i32, %arg2: memref<1x54x256xf32, #tpu.memory_space<vmem>>, %arg3: memref<36x54xf32, #tpu.memory_space<vmem>>, %arg4: memref<36x1xf32, #tpu.memory_space<vmem>>, %arg5: memref<1x36x256xf32, #tpu.memory_space<vmem>>) attributes {dimension_semantics = [#tpu.dimension_semantics<parallel>, #tpu.dimension_semantics<parallel>], iteration_bounds = array<i64: 2, 1>, scalar_prefetch = 0 : i64, scratch_operands = 0 : i64, tpu.core_type = #tpu.core_type<tc>, window_params = [{transform_indices = @transform_0, window_bounds = array<i64: 1, 54, 256>}, {pipeline_mode = #tpu.pipeline_mode<synchronous>, transform_indices = @transform_1, window_bounds = array<i64: 36, 54>}, {pipeline_mode = #tpu.pipeline_mode<synchronous>, transform_indices = @transform_2, window_bounds = array<i64: 36, 1>}, {transform_indices = @transform_3, window_bounds = array<i64: 1, 36, 256>}]} {
    %c0 = arith.constant 0 : index
    %c0_0 = arith.constant 0 : index
    %0 = vector.load %arg3[%c0, %c0_0] : memref<36x54xf32, #tpu.memory_space<vmem>>, vector<36x54xf32>
    %c0_1 = arith.constant 0 : index
    %c0_2 = arith.constant 0 : index
    %c0_3 = arith.constant 0 : index
    %1 = vector.load %arg2[%c0_1, %c0_2, %c0_3] : memref<1x54x256xf32, #tpu.memory_space<vmem>>, vector<1x54x256xf32>
    %2 = vector.shape_cast %1 : vector<1x54x256xf32> to vector<54x256xf32>
    %cst = arith.constant dense<0.000000e+00> : vector<36x256xf32>
    %3 = tpu.matmul %0, %2, %cst {dimension_numbers = #tpu.dot_dimension_numbers<[1], [0], [0], [1], [0, 0, 1, 1], [], []>} : vector<36x54xf32>, vector<54x256xf32>, vector<36x256xf32> -> vector<36x256xf32>
    %c0_4 = arith.constant 0 : index
    %c0_5 = arith.constant 0 : index
    %4 = vector.load %arg4[%c0_4, %c0_5] : memref<36x1xf32, #tpu.memory_space<vmem>>, vector<36x1xf32>
    %5 = vector.broadcast %4 : vector<36x1xf32> to vector<36x256xf32>
    %6 = arith.addf %3, %5 : vector<36x256xf32>
    %c0_6 = arith.constant 0 : index
    %c0_7 = arith.constant 0 : index
    %c0_8 = arith.constant 0 : index
    %7 = vector.load %arg5[%c0_6, %c0_7, %c0_8] : memref<1x36x256xf32, #tpu.memory_space<vmem>>, vector<1x36x256xf32>
    %8 = vector.shape_cast %7 : vector<1x36x256xf32> to vector<36x256xf32>
    %9 = vector.shape_cast %6 : vector<36x256xf32> to vector<1x36x256xf32>
    tpu.vector_store %arg5[%c0_6, %c0_7, %c0_8], %9 {strides = array<i32>} : memref<1x36x256xf32, #tpu.memory_space<vmem>>, vector<1x36x256xf32>,
    return
  }
  func.func @transform_0(%arg0: i32, %arg1: i32) -> (i32, i32, i32) {
    %c0_i32 = arith.constant 0 : i32
    %c0_i32_0 = arith.constant 0 : i32
    return %arg0, %c0_i32, %arg1 : i32, i32, i32
  }
  func.func @transform_1(%arg0: i32, %arg1: i32) -> (i32, i32) {
    %c0_i32 = arith.constant 0 : i32
    %c0_i32_0 = arith.constant 0 : i32
    %c0_i32_1 = arith.constant 0 : i32
    return %c0_i32, %c0_i32_0 : i32, i32
  }
  func.func @transform_2(%arg0: i32, %arg1: i32) -> (i32, i32) {
    %c0_i32 = arith.constant 0 : i32
    %c0_i32_0 = arith.constant 0 : i32
    %c0_i32_1 = arith.constant 0 : i32
    return %c0_i32, %c0_i32_0 : i32, i32
  }
  func.func @transform_3(%arg0: i32, %arg1: i32) -> (i32, i32, i32) {
    %c0_i32 = arith.constant 0 : i32
    %c0_i32_0 = arith.constant 0 : i32
    return %arg0, %c0_i32, %arg1 : i32, i32, i32
  }
}

</mosaic_0001>

<llo_original>
// kernel: tpu_custom_call.1
$region0: #{tpu_custom_call.1}
  #allocation0 [shape = 'u32[]', space=smem, size = 0x4, offset = 0x4, fixed_abs, tag = 'smem constant byte address 0x4 - core index']
  #allocation1 [shape = 'u32[72,128]{1,0:T(1,128)}', space=vmem, size = 0x9000, scoped, tag = 'internal scratch']
  %s0 = inlined_call_operand.vmem [shape: f32[2,54,256], index: 0, kind: input, shape index: {}]
  %s1 = inlined_call_operand.vmem [shape: f32[36,54], index: 1, kind: input, shape index: {}]
  %s2 = inlined_call_operand.vmem [shape: f32[36,1], index: 2, kind: input, shape index: {}]
  %s3 = inlined_call_operand.vmem [shape: f32[2,36,256], index: 3, kind: output, shape index: {}]
  %s4 = sld [smem:[#allocation0]]
  $region45: #{tpu_custom_call.1} parent=0
    _
  %s6 = ssub.s32 1, %s4
  %s7 = scalar_select 0, %s6, %s4
  loop: start=0, step=1, limit=4
  $region2: #{tpu_custom_call.1} parent=0 // loop_pre_header
    _
  $region3: #{tpu_custom_call.1} parent=0 // loop_header
    %s9 = sphi 0, %s13
    %p10 = scmp.ge.s32.totalorder %s9, 4
    %s16 = sphi 0, %s28
    %s17 = sphi 0, %s24
    %s18 = sphi 0, %s16
    %s19 = sphi 0, %s17
    %s20 = sphi 0, %s18
    %s21 = sphi 0, %s19
    %s33 = sphi 0, %s35
    %s36 = sphi 0, %s33
    %s37 = sphi 0, %s36
    %s53 = sphi 0, %s37
    %s57 = sphi 0, %s57
    %s59 = sphi 0, %s57
    %s60 = sphi 0, %s59
    %s74 = sphi 0, %s60
    %s78 = sphi 0, %s78
    %s80 = sphi 0, %s78
    %s81 = sphi 0, %s80
    %s95 = sphi 0, %s81
    %s103 = sphi 0, %s105
    %s106 = sphi 0, %s103
    %s107 = sphi 0, %s106
    %s123 = sphi 0, %s107
  $region4: #{tpu_custom_call.1} parent=0 // loop_header_branch
    %12 = sbr.rel (%p10) target = $region8
  $region5: #{tpu_custom_call.1} parent=0 // loop_body
    %s14 = ssub.s32 %s9, 1
    %s15 = ssub.s32 %s9, 2
    %s22 = sadd.s32 1, %s17
    %p23 = scmp.ge.s32.totalorder %s22, 1
    %s24 = scalar_select %p23, 0, %s22
    %s25 = sadd.s32 1, %s16
    %s26 = scalar_select %p23, %s25, %s16
    %p27 = scmp.ge.s32.totalorder %s26, 2
    %s28 = scalar_select %p27, 0, %s26
    %s29 = ssub.s32 %s16, %s28
    %s30 = ssub.s32 %s17, %s24
    %s31 = sor.u32 %s29, %s30
    %p32 = scmp.eq.s32.totalorder %s31, 0
    %s34 = sadd.s32 %s33, 1
    %s35 = scalar_select %p32, %s33, %s34
    %p38 = pneg %p32
    %p39 = scmp.eq.s32.totalorder %s9, 1
    %p40 = por %p38, %p39
    %p41 = scmp.ne.s32.totalorder %s33, %s36
    %p42 = scmp.eq.s32.totalorder %s9, 0
    %p43 = por %p41, %p42
    %p44 = scmp.ne.s32.totalorder %s33, %s36
    %p45 = scmp.eq.s32.totalorder %s14, 1
    %p46 = por %p44, %p45
    %p47 = scmp.ne.s32.totalorder %s36, %s37
    %p48 = scmp.eq.s32.totalorder %s14, 0
    %p49 = por %p47, %p48
    %p50 = scmp.ne.s32.totalorder %s36, %s37
    %p51 = scmp.eq.s32.totalorder %s15, 1
    %p52 = por %p50, %p51
    %p54 = scmp.ne.s32.totalorder %s37, %s53
    %p55 = scmp.eq.s32.totalorder %s15, 0
    %p56 = por %p54, %p55
    %s58 = sadd.s32 %s57, 1
    %p61 = scmp.eq.s32.totalorder %s9, 1
    %p62 = scmp.ne.s32.totalorder %s57, %s59
    %p63 = scmp.eq.s32.totalorder %s9, 0
    %p64 = por %p62, %p63
    %p65 = scmp.ne.s32.totalorder %s57, %s59
    %p66 = scmp.eq.s32.totalorder %s14, 1
    %p67 = por %p65, %p66
    %p68 = scmp.ne.s32.totalorder %s59, %s60
    %p69 = scmp.eq.s32.totalorder %s14, 0
    %p70 = por %p68, %p69
    %p71 = scmp.ne.s32.totalorder %s59, %s60
    %p72 = scmp.eq.s32.totalorder %s15, 1
    %p73 = por %p71, %p72
    %p75 = scmp.ne.s32.totalorder %s60, %s74
    %p76 = scmp.eq.s32.totalorder %s15, 0
    %p77 = por %p75, %p76
    %s79 = sadd.s32 %s78, 1
    %p82 = scmp.eq.s32.totalorder %s9, 1
    %p83 = scmp.ne.s32.totalorder %s78, %s80
    %p84 = scmp.eq.s32.totalorder %s9, 0
    %p85 = por %p83, %p84
    %p86 = scmp.ne.s32.totalorder %s78, %s80
    %p87 = scmp.eq.s32.totalorder %s14, 1
    %p88 = por %p86, %p87
    %p89 = scmp.ne.s32.totalorder %s80, %s81
    %p90 = scmp.eq.s32.totalorder %s14, 0
    %p91 = por %p89, %p90
    %p92 = scmp.ne.s32.totalorder %s80, %s81
    %p93 = scmp.eq.s32.totalorder %s15, 1
    %p94 = por %p92, %p93
    %p96 = scmp.ne.s32.totalorder %s81, %s95
    %p97 = scmp.eq.s32.totalorder %s15, 0
    %p98 = por %p96, %p97
    %s99 = ssub.s32 %s16, %s28
    %s100 = ssub.s32 %s17, %s24
    %s101 = sor.u32 %s99, %s100
    %p102 = scmp.eq.s32.totalorder %s101, 0
    %s104 = sadd.s32 %s103, 1
    %s105 = scalar_select %p102, %s103, %s104
    %p108 = pneg %p102
    %p109 = scmp.eq.s32.totalorder %s9, 1
    %p110 = por %p108, %p109
    %p111 = scmp.ne.s32.totalorder %s103, %s106
    %p112 = scmp.eq.s32.totalorder %s9, 0
    %p113 = por %p111, %p112
    %p114 = scmp.ne.s32.totalorder %s103, %s106
    %p115 = scmp.eq.s32.totalorder %s14, 1
    %p116 = por %p114, %p115
    %p117 = scmp.ne.s32.totalorder %s106, %s107
    %p118 = scmp.eq.s32.totalorder %s14, 0
    %p119 = por %p117, %p118
    %p120 = scmp.ne.s32.totalorder %s106, %s107
    %p121 = scmp.eq.s32.totalorder %s15, 1
    %p122 = por %p120, %p121
    %p124 = scmp.ne.s32.totalorder %s107, %s123
    %p125 = scmp.eq.s32.totalorder %s15, 0
    %p126 = por %p124, %p125
    %p127 = scmp.le.s32.totalorder 1, %s9
    %p128 = scmp.lt.s32.totalorder %s9, 3
    %p129 = pnand %p127, %p128
    %p130 = pneg %p129
    // Predicated region
    $region9: #{tpu_custom_call.1} parent=5 // pred_check
      _
    $region10: #{tpu_custom_call.1} parent=5 // pred_check_branch
      %132 = sbr.rel (%p129) target = $region12
    $region11: #{tpu_custom_call.1} parent=5 // pred_region
      %s133 = ssub.s32 %s9, 1
      // Predicated region
      $region13: #{tpu_custom_call.1} parent=11 // pred_check
        %p134 = pneg %p70
      $region14: #{tpu_custom_call.1} parent=11 // pred_check_branch
        %136 = sbr.rel (%p134) target = $region16
      $region15: #{tpu_custom_call.1} parent=11 // pred_region
        _
      $region16: #{tpu_custom_call.1} parent=11 // pred_fallthru
        _
      // Predicated region
      $region17: #{tpu_custom_call.1} parent=11 // pred_check
        %p137 = pneg %p91
      $region18: #{tpu_custom_call.1} parent=11 // pred_check_branch
        %139 = sbr.rel (%p137) target = $region20
      $region19: #{tpu_custom_call.1} parent=11 // pred_region
        _
      $region20: #{tpu_custom_call.1} parent=11 // pred_fallthru
        _
    $region12: #{tpu_custom_call.1} parent=5 // pred_fallthru
      _
    %p140 = scmp.lt.s32.totalorder %s9, 2
    // Predicated region
    $region21: #{tpu_custom_call.1} parent=5 // pred_check
      %p141 = pneg %p140
    $region22: #{tpu_custom_call.1} parent=5 // pred_check_branch
      %143 = sbr.rel (%p141) target = $region24
    $region23: #{tpu_custom_call.1} parent=5 // pred_region
      // Predicated region
      $region25: #{tpu_custom_call.1} parent=23 // pred_check
        %p144 = pneg %p43
      $region26: #{tpu_custom_call.1} parent=23 // pred_check_branch
        %146 = sbr.rel (%p144) target = $region28
      $region27: #{tpu_custom_call.1} parent=23 // pred_region
        %s147 = smul.u32 2, %s17
        %p148 = scmp.lt.s32.totalorder %s16, 1
        %s149 = scalar_select %p148, %s16, 1
        %p150 = scmp.lt.s32.totalorder %s147, 1
        %s151 = scalar_select %p150, %s147, 1
        %s152 = smul.addr %s149, 14
        %s153 = sadd.s32 %s151, %s152
        %s154 = smul.addr %s153, 8
        %s155 = scalar_lea.vmem %s0, %s154
        %s156 = smul.u32 2, %s17
      $region28: #{tpu_custom_call.1} parent=23 // pred_fallthru
        _
    $region24: #{tpu_custom_call.1} parent=5 // pred_fallthru
      _
    %p157 = scmp.le.s32.totalorder 1, %s9
    %p158 = scmp.lt.s32.totalorder %s9, 3
    %p159 = pnand %p157, %p158
    %p160 = pneg %p159
    // Predicated region
    $region29: #{tpu_custom_call.1} parent=5 // pred_check
      _
    $region30: #{tpu_custom_call.1} parent=5 // pred_check_branch
      %162 = sbr.rel (%p159) target = $region32
    $region31: #{tpu_custom_call.1} parent=5 // pred_region
      %s163 = ssub.s32 %s9, 1
      %s164 = smul.u32 2, %s19
      %p165 = scmp.lt.s32.totalorder %s18, 1
      %s166 = scalar_select %p165, %s18, 1
      %p167 = scmp.lt.s32.totalorder %s164, 1
      %s168 = scalar_select %p167, %s164, 1
      %s169 = smul.addr %s166, 14
      %s170 = sadd.s32 %s168, %s169
      %s171 = smul.addr %s170, 8
      %s172 = scalar_lea.vmem %s0, %s171
      %p173 = pneg %p49
      %p174 = pneg %p46
      %p175 = pneg %p70
      %p176 = pneg %p67
      %p177 = pneg %p91
      %p178 = pneg %p88
      %p179 = pneg %p119
      %p180 = pneg %p116
      %s181 = smul.u32 2, %s19
      %p182 = scmp.lt.s32.totalorder %s18, 1
      %s183 = scalar_select %p182, %s18, 1
      %p184 = scmp.lt.s32.totalorder %s181, 1
      %s185 = scalar_select %p184, %s181, 1
      %s186 = smul.addr %s183, 10
      %s187 = sadd.s32 %s185, %s186
      %s188 = smul.addr %s187, 8
      %s189 = scalar_lea.vmem %s3, %s188
      %s190 = smul.u32 2, %s19
      %p191 = scmp.lt.s32.totalorder %s18, 1
      %s192 = scalar_select %p191, %s18, 1
      %p193 = scmp.lt.s32.totalorder %s190, 1
      %s194 = scalar_select %p193, %s190, 1
      %s195 = smul.addr %s192, 14
      %s196 = sadd.s32 %s194, %s195
      %s197 = smul.addr %s196, 8
      %s198 = scalar_lea.vmem %s0, %s197
      %s199 = smul.u32 2, %s19
      %s200 = smul.u32 2, %s19
      %p201 = scmp.lt.s32.totalorder %s18, 1
      %s202 = scalar_select %p201, %s18, 1
      %p203 = scmp.lt.s32.totalorder %s200, 1
      %s204 = scalar_select %p203, %s200, 1
      %s205 = smul.addr %s202, 10
      %s206 = sadd.s32 %s204, %s205
      %s207 = smul.addr %s206, 8
      %s208 = scalar_lea.vmem %s3, %s207
      %s209 = smul.u32 2, %s19
      %v210 = vld [vmem:[%s1] sm:$0xff]
      %v211 = vld [vmem:[%s1 + $0x8] sm:$0xff]
      %v212 = vld [vmem:[%s1 + $0x10] sm:$0xff]
      %v213 = vld [vmem:[%s1 + $0x18] sm:$0xff]
      %v214 = vld [vmem:[%s1 + $0x20] sm:$0xf]
      %v215 = vld [vmem:[%s198] sm:$0xff]
      %v216 = vld [vmem:[%s198 + $0x8] sm:$0xff]
      %v217 = vld [vmem:[%s198 + $0x10] sm:$0xff]
      %v218 = vld [vmem:[%s198 + $0x18] sm:$0xff]
      %v219 = vld [vmem:[%s198 + $0x20] sm:$0xff]
      %v220 = vld [vmem:[%s198 + $0x28] sm:$0xff]
      %v221 = vld [vmem:[%s198 + $0x30] sm:$0xff]
      %v222 = vld [vmem:[%s198 + $0x38] sm:$0xff]
      %v223 = vld [vmem:[%s198 + $0x40] sm:$0xff]
      %v224 = vld [vmem:[%s198 + $0x48] sm:$0xff]
      %v225 = vld [vmem:[%s198 + $0x50] sm:$0xff]
      %v226 = vld [vmem:[%s198 + $0x58] sm:$0xff]
      %v227 = vld [vmem:[%s198 + $0x60] sm:$0x3f]
      %v228 = vld [vmem:[%s198 + $0x68] sm:$0x3f]
      %v229 = vld [vmem:[%s2] sm:$0xff]
      %v230 = vld [vmem:[%s2 + $0x8] sm:$0xff]
      %v231 = vld [vmem:[%s2 + $0x10] sm:$0xff]
      %v232 = vld [vmem:[%s2 + $0x18] sm:$0xff]
      %v233 = vld [vmem:[%s2 + $0x20] sm:$0xf]
      %235 = vset.pattern.permute.xlu0 0
      %236 = vperm.xlu0 %235, %v229
      %v237 = vpop.permute.xlu0 %236
      %240 = vset.pattern.permute.xlu0 0
      %241 = vperm.xlu0 %240, %v230
      %v242 = vpop.permute.xlu0 %241
      %245 = vset.pattern.permute.xlu0 0
      %246 = vperm.xlu0 %245, %v231
      %v247 = vpop.permute.xlu0 %246
      %250 = vset.pattern.permute.xlu0 0
      %251 = vperm.xlu0 %250, %v232
      %v252 = vpop.permute.xlu0 %251
      %255 = vset.pattern.permute.xlu0 0
      %256 = vperm.xlu0 %255, %v233
      %v257 = vpop.permute.xlu0 %256
      %vm259 = vcmask 441344
      %v261 = vsel %vm259, %v210, 0
      %v264 = vsel %vm259, %v211, 0
      %v267 = vsel %vm259, %v212, 0
      %v270 = vsel %vm259, %v213, 0
      %v273 = vsel %vm259, %v214, 0
      %vm275 = vcmask 1045504
      %v277 = vsel %vm275, %v227, 0
      %v280 = vsel %vm275, %v228, 0
      %282 = vmatpush.msra.mxu0 0.0
      %283 = vmatpush.msra.mxu0 0.0
      %284 = vmatpush.msra.mxu0 0.0
      %285 = vmatpush.msra.mxu0 0.0
      %286 = vmatpush.msra.mxu0 0.0
      %287 = vmatpush.msra.mxu0 0.0
      %288 = vmatpush.msra.mxu0 0.0
      %289 = vmatpush.msra.mxu0 0.0
      %290 = vmatpush.msra.mxu0 0.0
      %291 = vmatpush.msra.mxu0 %v277
      %292 = vmatpush.msra.mxu0 %v225
      %293 = vmatpush.msra.mxu0 %v223
      %294 = vmatpush.msra.mxu0 %v221
      %295 = vmatpush.msra.mxu0 %v219
      %296 = vmatpush.msra.mxu0 %v217
      %297 = vmatpush.msra.mxu0 %v215
      %298 = vmatmul.f32.gmra.mxu0 %v261
      %v299 = vpop.f32.mrf.mxu0
      %v300 = vadd.f32 %v237, %v299
      %301 = vmatmul.f32.gmra.mxu0 %v264
      %v302 = vpop.f32.mrf.mxu0
      %v303 = vadd.f32 %v242, %v302
      %304 = vmatmul.f32.gmra.mxu0 %v267
      %v305 = vpop.f32.mrf.mxu0
      %v306 = vadd.f32 %v247, %v305
      %307 = vmatmul.f32.gmra.mxu0 %v270
      %v308 = vpop.f32.mrf.mxu0
      %v309 = vadd.f32 %v252, %v308
      %310 = vmatmul.f32.gmra.mxu0 %v273
      %v311 = vpop.f32.mrf.mxu0
      %v312 = vadd.f32 %v257, %v311
      %313 = vdwg.mxu0
      %314 = vmatpush.msra.mxu0 0.0
      %315 = vmatpush.msra.mxu0 0.0
      %316 = vmatpush.msra.mxu0 0.0
      %317 = vmatpush.msra.mxu0 0.0
      %318 = vmatpush.msra.mxu0 0.0
      %319 = vmatpush.msra.mxu0 0.0
      %320 = vmatpush.msra.mxu0 0.0
      %321 = vmatpush.msra.mxu0 0.0
      %322 = vmatpush.msra.mxu0 0.0
      %323 = vmatpush.msra.mxu0 %v280
      %324 = vmatpush.msra.mxu0 %v226
      %325 = vmatpush.msra.mxu0 %v224
      %326 = vmatpush.msra.mxu0 %v222
      %327 = vmatpush.msra.mxu0 %v220
      %328 = vmatpush.msra.mxu0 %v218
      %329 = vmatpush.msra.mxu0 %v216
      %330 = vmatmul.f32.gmra.mxu0 %v261
      %v331 = vpop.f32.mrf.mxu0
      %v332 = vadd.f32 %v237, %v331
      %333 = vmatmul.f32.gmra.mxu0 %v264
      %v334 = vpop.f32.mrf.mxu0
      %v335 = vadd.f32 %v242, %v334
      %336 = vmatmul.f32.gmra.mxu0 %v267
      %v337 = vpop.f32.mrf.mxu0
      %v338 = vadd.f32 %v247, %v337
      %339 = vmatmul.f32.gmra.mxu0 %v270
      %v340 = vpop.f32.mrf.mxu0
      %v341 = vadd.f32 %v252, %v340
      %342 = vmatmul.f32.gmra.mxu0 %v273
      %v343 = vpop.f32.mrf.mxu0
      %v344 = vadd.f32 %v257, %v343
      %345 = vdwg.mxu0
      %346 = vst [vmem:[%s208] sm:$0xff] %v300
      %347 = vst [vmem:[%s208 + $0x8] sm:$0xff] %v332
      %348 = vst [vmem:[%s208 + $0x10] sm:$0xff] %v303
      %349 = vst [vmem:[%s208 + $0x18] sm:$0xff] %v335
      %350 = vst [vmem:[%s208 + $0x20] sm:$0xff] %v306
      %351 = vst [vmem:[%s208 + $0x28] sm:$0xff] %v338
      %352 = vst [vmem:[%s208 + $0x30] sm:$0xff] %v309
      %353 = vst [vmem:[%s208 + $0x38] sm:$0xff] %v341
      %354 = vst [vmem:[%s208 + $0x40] sm:$0xf] %v312
      %355 = vst [vmem:[%s208 + $0x48] sm:$0xf] %v344
      %s356 = smul.u32 2, %s19
      %p357 = scmp.lt.s32.totalorder %s18, 1
      %s358 = scalar_select %p357, %s18, 1
      %p359 = scmp.lt.s32.totalorder %s356, 1
      %s360 = scalar_select %p359, %s356, 1
      %s361 = smul.addr %s358, 10
      %s362 = sadd.s32 %s360, %s361
      %s363 = smul.addr %s362, 8
      %s364 = scalar_lea.vmem %s3, %s363
      // Predicated region
      $region33: #{tpu_custom_call.1} parent=31 // pred_check
        %p365 = pneg %p116
      $region34: #{tpu_custom_call.1} parent=31 // pred_check_branch
        %367 = sbr.rel (%p365) target = $region36
      $region35: #{tpu_custom_call.1} parent=31 // pred_region
        %s368 = smul.u32 2, %s19
      $region36: #{tpu_custom_call.1} parent=31 // pred_fallthru
        _
    $region32: #{tpu_custom_call.1} parent=5 // pred_fallthru
      _
    %p369 = scmp.le.s32.totalorder 2, %s9
    // Predicated region
    $region37: #{tpu_custom_call.1} parent=5 // pred_check
      %p370 = pneg %p369
    $region38: #{tpu_custom_call.1} parent=5 // pred_check_branch
      %372 = sbr.rel (%p370) target = $region40
    $region39: #{tpu_custom_call.1} parent=5 // pred_region
      %s373 = ssub.s32 %s9, 2
      // Predicated region
      $region41: #{tpu_custom_call.1} parent=39 // pred_check
        %p374 = pneg %p122
      $region42: #{tpu_custom_call.1} parent=39 // pred_check_branch
        %376 = sbr.rel (%p374) target = $region44
      $region43: #{tpu_custom_call.1} parent=39 // pred_region
        %s377 = smul.u32 2, %s21
        %p378 = scmp.lt.s32.totalorder %s20, 1
        %s379 = scalar_select %p378, %s20, 1
        %p380 = scmp.lt.s32.totalorder %s377, 1
        %s381 = scalar_select %p380, %s377, 1
        %s382 = smul.addr %s379, 10
        %s383 = sadd.s32 %s381, %s382
        %s384 = smul.addr %s383, 8
        %s385 = scalar_lea.vmem %s3, %s384
      $region44: #{tpu_custom_call.1} parent=39 // pred_fallthru
        _
    $region40: #{tpu_custom_call.1} parent=5 // pred_fallthru
      _
  $region6: #{tpu_custom_call.1} parent=0 // loop_footer
    %s13 = sadd.s32 1, %s9
  $region7: #{tpu_custom_call.1} parent=0 // loop_footer_branch
    %8 = sbr.rel target = $region3
  $region8: #{tpu_custom_call.1} parent=0 // loop_exit
    _

</llo_original>
